<compile_context>
chip_gen: v6e
topology: v6e:2x2x1
jax: 0.10.0
libtpu: 0.0.40
codegen_flags: <defaults>
</compile_context>

<pallas_src>
import functools

import jax
import jax.numpy as jnp
from jax import lax
from jax.experimental import pallas as pl
from jax.experimental.pallas import tpu as pltpu

_LANE = 128


def _round_up(x, m):
    return ((x + m - 1) // m) * m


def _seg_loss_kernel(w_ref, pred_ref, tgt_ref, out_ref, *, num_classes, hw,
                     t_sub, chunk, n_full, rem, ignore_index, needs_mask):
    """One grid step = one (frame, hw-tile).

    pred_ref: (1, C, t_sub, 128) native dtype (e.g. bf16)
    tgt_ref:  (1, t_sub, 128)    native integer dtype (e.g. uint8)
    out_ref:  (1, 1, 1, 128)     f32 lane-dense partial sum for this tile
    """
    C = num_classes
    tile = pl.program_id(1)
    row_base = tile * t_sub
    # Hoist scalar class weights (SMEM reads) out of the chunk loop.
    wts = [w_ref[c] for c in range(C)]

    def chunk_loss(r0, nrows):
        # Narrow labels widened in-register (cheap), not in HBM.
        tgt = tgt_ref[0, pl.ds(r0, nrows), :].astype(jnp.int32)

        # Channel max in the native dtype (exact); cast to f32 once.
        m = pred_ref[0, 0, pl.ds(r0, nrows), :]
        for c in range(1, C):
            m = jnp.maximum(m, pred_ref[0, c, pl.ds(r0, nrows), :])
        m = m.astype(jnp.float32)

        # Fused pass over channels: sum-exp + select-gather of logit[y] and
        # weight[y].  Accumulators are (nrows,128) vreg-resident values.
        se = jnp.zeros_like(m)
        zy = jnp.zeros_like(m)
        wy = jnp.zeros_like(m)
        for c in range(C):
            z = pred_ref[0, c, pl.ds(r0, nrows), :].astype(jnp.float32) - m
            se = se + jnp.exp(z)
            sel = tgt == c
            zy = jnp.where(sel, z, zy)
            wy = jnp.where(sel, wts[c], wy)

        # Weighted NLL; labels >= C (ignore_index, out-of-range) give wy == 0.
        loss = wy * (jnp.log(se) - zy)
        if 0 <= ignore_index < C:
            loss = jnp.where(tgt == ignore_index, 0.0, loss)
        if needs_mask:
            # Ragged tail: mask pixels past H*W (padding values are irrelevant).
            row = row_base + r0 + lax.broadcasted_iota(jnp.int32, (nrows, _LANE), 0)
            pix = row * _LANE + lax.broadcasted_iota(jnp.int32, (nrows, _LANE), 1)
            loss = jnp.where(pix < hw, loss, 0.0)
        # Fold to a single lane-dense row (tiny XLU reduce, hidden under VALU).
        return jnp.sum(loss, axis=0, keepdims=True)          # (1, 128)

    total = jnp.zeros((1, _LANE), jnp.float32)
    if n_full == 1:
        total = total + chunk_loss(0, chunk)                  # static offset
    elif n_full > 1:
        def body(ci, acc):
            r0 = pl.multiple_of(ci * chunk, chunk)             # aligned dyn start
            return acc + chunk_loss(r0, chunk)
        total = lax.fori_loop(0, n_full, body, total, unroll=2)
    if rem > 0:
        total = total + chunk_loss(n_full * chunk, rem)        # static tail
    out_ref[0, 0] = total


def segmentation_loss(prediction, target, class_weights, *, ignore_index=255,
                      use_top_k=False, top_k_ratio=1.0, future_discount=1.0,
                      max_block_bytes=2 * 1024 * 1024, chunk_rows=32):
    """JAX/Pallas equivalent of fiery SegmentationLoss.forward.

    prediction: (B, S, C, H, W) float (kept in its native dtype, e.g. bf16)
    target:     (B, S, 1, H, W) integer labels in any int dtype (uint8 is the
                cheapest through HBM); may contain ignore_index.
    """
    if target.shape[-3] != 1:
        raise ValueError("segmentation label must be an index-label with channel dimension = 1.")
    if use_top_k and top_k_ratio < 1.0:
        # TODO(synk): top-k (sorted) loss selection has no clean in-kernel Pallas
        # equivalent here; only top_k_ratio == 1.0 (identity) is supported.
        raise NotImplementedError("use_top_k with top_k_ratio < 1.0 not implemented")

    B, S, C, H, W = prediction.shape
    BS, HW = B * S, H * W
    class_weights = jnp.asarray(class_weights, jnp.float32).reshape(-1)
    if class_weights.shape[0] != C:
        raise ValueError("class_weights must have one entry per class.")

    pred_item = jnp.dtype(prediction.dtype).itemsize
    tgt_item = jnp.dtype(target.dtype).itemsize
    # Sublane packing granularity: f32/i32 -> 8 rows, bf16/i16 -> 16, u8/i8 -> 32.
    granule = max(32 // pred_item, 32 // tgt_item, 8)

    T = pl.cdiv(HW, _LANE)                        # 128-lane pixel rows per frame
    # Rows per hw-tile: largest granule multiple keeping (pred + tgt) block under
    # max_block_bytes.  ~2 MiB default is v7x (64 MiB VMEM) / v5e safe; raise on
    # v6e if profiling shows grid-step overhead.
    bytes_per_row = _LANE * (C * pred_item + tgt_item)
    t_cap = max(granule, (max_block_bytes // bytes_per_row) // granule * granule)
    if T <= t_cap:
        n_tiles, t_sub = 1, T                     # block == full dim, no alignment pad
    else:
        n_tiles = pl.cdiv(T, t_cap)               # balanced tiles -> bounded padding
        t_sub = _round_up(pl.cdiv(T, n_tiles), granule)
    T_pad = n_tiles * t_sub
    HWp = T_pad * _LANE
    needs_mask = HWp != HW

    # Free reshapes; native dtypes kept through HBM/DMA (no f32/i32 upcast).
    pred = prediction.reshape(BS, C, HW)
    tgt = target.reshape(BS, HW)
    if needs_mask:
        # Only when H*W is not lane/tile aligned; pad values are irrelevant
        # because the kernel masks padded pixels by index.
        pred = jnp.pad(pred, ((0, 0), (0, 0), (0, HWp - HW)))
        tgt = jnp.pad(tgt, ((0, 0), (0, HWp - HW)))
    pred = pred.reshape(BS, C, T_pad, _LANE)
    tgt = tgt.reshape(BS, T_pad, _LANE)

    # Inner chunking so per-chunk accumulators stay in vregs; dynamic slice
    # starts are kept aligned to the packed-dtype sublane granularity.
    chunk = min(max(int(chunk_rows), 1), t_sub)
    if chunk < t_sub:
        chunk = min(_round_up(chunk, granule), t_sub)
    n_full, rem = divmod(t_sub, chunk)

    kernel = functools.partial(
        _seg_loss_kernel, num_classes=C, hw=HW, t_sub=t_sub, chunk=chunk,
        n_full=n_full, rem=rem, ignore_index=ignore_index, needs_mask=needs_mask)

    grid_spec = pltpu.PrefetchScalarGridSpec(
        num_scalar_prefetch=0,
        grid=(BS, n_tiles),                                    # fully parallel
        in_specs=[
            pl.BlockSpec(memory_space=pltpu.MemorySpace.SMEM),          # weights (C,)
            pl.BlockSpec((1, C, t_sub, _LANE), lambda i, t: (i, 0, t, 0)),  # prediction
            pl.BlockSpec((1, t_sub, _LANE), lambda i, t: (i, t, 0)),        # target
        ],
        out_specs=pl.BlockSpec((1, 1, 1, _LANE), lambda i, t: (i, t, 0, 0)),
    )

    partials = pl.pallas_call(
        kernel,
        out_shape=jax.ShapeDtypeStruct((BS, n_tiles, 1, _LANE), jnp.float32),
        grid_spec=grid_spec,
        compiler_params=pltpu.CompilerParams(
            dimension_semantics=("parallel", "parallel")),
    )(class_weights, pred, tgt)

    # Tiny final reduce, future discount and plain mean in the wrapper.
    per_frame = jnp.sum(partials, axis=(1, 2, 3)).reshape(B, S)
    disc = jnp.float32(future_discount) ** jnp.arange(S, dtype=jnp.float32)
    total = jnp.sum(per_frame * disc[None, :])
    return total / jnp.float32(B * S * HW)


def _reference_loss(prediction, target, class_weights, *, ignore_index=255,
                    future_discount=1.0):
    """Pure-JAX reference mirroring the PyTorch module (use_top_k=False path)."""
    B, S, C, H, W = prediction.shape
    logp = jax.nn.log_softmax(prediction.astype(jnp.float32), axis=2)
    tgt = target[:, :, 0].astype(jnp.int32)                    # (B,S,H,W)
    tgt_c = jnp.clip(tgt, 0, C - 1)
    picked = jnp.take_along_axis(logp, tgt_c[:, :, None], axis=2)[:, :, 0]
    wy = jnp.asarray(class_weights, jnp.float32)[tgt_c]
    valid = tgt != ignore_index
    loss = jnp.where(valid, -wy * picked, 0.0)
    disc = jnp.float32(future_discount) ** jnp.arange(S, dtype=jnp.float32)
    loss = loss * disc[None, :, None, None]
    return jnp.mean(loss)


if __name__ == "__main__":
    root = jax.random.PRNGKey(0)
    future_discount = 0.95

    def make_case(key, B, S, C, H, W, pred_dtype, tgt_dtype, ignore_index=255):
        k1, k2, k3 = jax.random.split(key, 3)
        pred = jax.random.normal(k1, (B, S, C, H, W), dtype=jnp.float32).astype(pred_dtype)
        labels = jax.random.randint(k2, (B, S, 1, H, W), 0, C, dtype=jnp.int32)
        ign = jax.random.uniform(k3, (B, S, 1, H, W)) < 0.1
        target = jnp.where(ign, jnp.int32(ignore_index), labels).astype(tgt_dtype)
        weights = 0.5 + 0.25 * jnp.arange(C, dtype=jnp.float32)
        return pred, target, weights

    cases = [
        # (name, (B,S,C,H,W), pred dtype, target dtype, kernel kwargs)
        ("small_bf16_u8", (2, 3, 4, 16, 16), jnp.bfloat16, jnp.uint8, {}),
        # Forces 2 hw-tiles + fori_loop chunking + in-kernel ragged-tail mask.
        ("multitile_ragged_bf16_u8", (1, 2, 3, 96, 96), jnp.bfloat16, jnp.uint8,
         dict(max_block_bytes=57344)),
        # Plain-dtype path: single tile, chunk loop + static tail, no padding.
        ("chunked_f32_i32", (1, 2, 3, 96, 96), jnp.float32, jnp.int32, {}),
    ]

    keys = jax.random.split(root, len(cases))
    for key, (name, dims, pdt, tdt, kw) in zip(keys, cases):
        B, S, C, H, W = dims
        pred, target, weights = make_case(key, B, S, C, H, W, pdt, tdt)
        out = segmentation_loss(pred, target, weights, ignore_index=255,
                                future_discount=future_discount, **kw)
        out = jax.block_until_ready(out)
        ref = _reference_loss(pred, target, weights, ignore_index=255,
                              future_discount=future_discount)
        assert jnp.allclose(out, ref, rtol=5e-4, atol=1e-6), (name, out, ref)

    print("KERNEL_OK")
</pallas_src>

<mosaic_0001>
module attributes {stable_mosaic.version = 11 : i64} {
  func.func @_seg_loss_kernel(%arg0: i32, %arg1: i32, %arg2: memref<4xf32, #tpu.memory_space<smem>>, %arg3: memref<1x4x2x128xbf16, #tpu.memory_space<vmem>>, %arg4: memref<1x2x128xi8, #tpu.memory_space<vmem>>, %arg5: memref<1x1x1x128xf32, #tpu.memory_space<vmem>>) attributes {dimension_semantics = [#tpu.dimension_semantics<parallel>, #tpu.dimension_semantics<parallel>], iteration_bounds = array<i64: 6, 1>, scalar_prefetch = 0 : i64, scratch_operands = 0 : i64, tpu.core_type = #tpu.core_type<tc>, window_params = [{transform_indices = @transform_0, window_bounds = array<i64: 4>}, {transform_indices = @transform_1, window_bounds = array<i64: 1, 4, 2, 128>}, {transform_indices = @transform_2, window_bounds = array<i64: 1, 2, 128>}, {transform_indices = @transform_3, window_bounds = array<i64: 1, 1, 1, 128>}]} {
    %c0 = arith.constant 0 : index
    %0 = memref.load %arg2[%c0] : memref<4xf32, #tpu.memory_space<smem>>
    %c1 = arith.constant 1 : index
    %1 = memref.load %arg2[%c1] : memref<4xf32, #tpu.memory_space<smem>>
    %c2 = arith.constant 2 : index
    %2 = memref.load %arg2[%c2] : memref<4xf32, #tpu.memory_space<smem>>
    %c3 = arith.constant 3 : index
    %3 = memref.load %arg2[%c3] : memref<4xf32, #tpu.memory_space<smem>>
    %cst = arith.constant 0.000000e+00 : f32
    %4 = vector.broadcast %cst : f32 to vector<1x128xf32>
    %c0_0 = arith.constant 0 : index
    %c0_1 = arith.constant 0 : index
    %c0_2 = arith.constant 0 : index
    %5 = vector.load %arg4[%c0_0, %c0_1, %c0_2] : memref<1x2x128xi8, #tpu.memory_space<vmem>>, vector<1x2x128xi8>
    %6 = vector.shape_cast %5 : vector<1x2x128xi8> to vector<2x128xi8>
    %7 = arith.extui %6 : vector<2x128xi8> to vector<2x128xi32>
    %c0_3 = arith.constant 0 : index
    %c0_4 = arith.constant 0 : index
    %c0_5 = arith.constant 0 : index
    %c0_6 = arith.constant 0 : index
    %8 = vector.load %arg3[%c0_3, %c0_4, %c0_5, %c0_6] : memref<1x4x2x128xbf16, #tpu.memory_space<vmem>>, vector<1x1x2x128xbf16>
    %9 = vector.shape_cast %8 : vector<1x1x2x128xbf16> to vector<2x128xbf16>
    %c0_7 = arith.constant 0 : index
    %c1_8 = arith.constant 1 : index
    %c0_9 = arith.constant 0 : index
    %c0_10 = arith.constant 0 : index
    %10 = vector.load %arg3[%c0_7, %c1_8, %c0_9, %c0_10] : memref<1x4x2x128xbf16, #tpu.memory_space<vmem>>, vector<1x1x2x128xbf16>
    %11 = vector.shape_cast %10 : vector<1x1x2x128xbf16> to vector<2x128xbf16>
    %12 = arith.maximumf %9, %11 : vector<2x128xbf16>
    %c0_11 = arith.constant 0 : index
    %c2_12 = arith.constant 2 : index
    %c0_13 = arith.constant 0 : index
    %c0_14 = arith.constant 0 : index
    %13 = vector.load %arg3[%c0_11, %c2_12, %c0_13, %c0_14] : memref<1x4x2x128xbf16, #tpu.memory_space<vmem>>, vector<1x1x2x128xbf16>
    %14 = vector.shape_cast %13 : vector<1x1x2x128xbf16> to vector<2x128xbf16>
    %15 = arith.maximumf %12, %14 : vector<2x128xbf16>
    %c0_15 = arith.constant 0 : index
    %c3_16 = arith.constant 3 : index
    %c0_17 = arith.constant 0 : index
    %c0_18 = arith.constant 0 : index
    %16 = vector.load %arg3[%c0_15, %c3_16, %c0_17, %c0_18] : memref<1x4x2x128xbf16, #tpu.memory_space<vmem>>, vector<1x1x2x128xbf16>
    %17 = vector.shape_cast %16 : vector<1x1x2x128xbf16> to vector<2x128xbf16>
    %18 = arith.maximumf %15, %17 : vector<2x128xbf16>
    %19 = arith.extf %18 : vector<2x128xbf16> to vector<2x128xf32>
    %cst_19 = arith.constant 0.000000e+00 : f32
    %20 = vector.broadcast %cst_19 : f32 to vector<2x128xf32>
    %cst_20 = arith.constant 0.000000e+00 : f32
    %21 = vector.broadcast %cst_20 : f32 to vector<2x128xf32>
    %cst_21 = arith.constant 0.000000e+00 : f32
    %22 = vector.broadcast %cst_21 : f32 to vector<2x128xf32>
    %c0_22 = arith.constant 0 : index
    %c0_23 = arith.constant 0 : index
    %c0_24 = arith.constant 0 : index
    %c0_25 = arith.constant 0 : index
    %23 = vector.load %arg3[%c0_22, %c0_23, %c0_24, %c0_25] : memref<1x4x2x128xbf16, #tpu.memory_space<vmem>>, vector<1x1x2x128xbf16>
    %24 = vector.shape_cast %23 : vector<1x1x2x128xbf16> to vector<2x128xbf16>
    %25 = arith.extf %24 : vector<2x128xbf16> to vector<2x128xf32>
    %26 = arith.subf %25, %19 : vector<2x128xf32>
    %27 = math.exp %26 : vector<2x128xf32>
    %28 = arith.addf %20, %27 : vector<2x128xf32>
    %c0_i32 = arith.constant 0 : i32
    %29 = vector.broadcast %c0_i32 : i32 to vector<2x128xi32>
    %30 = arith.cmpi eq, %7, %29 : vector<2x128xi32>
    %31 = arith.select %30, %26, %21 : vector<2x128xi1>, vector<2x128xf32>
    %32 = vector.broadcast %0 : f32 to vector<2x128xf32>
    %33 = arith.select %30, %32, %22 : vector<2x128xi1>, vector<2x128xf32>
    %c0_26 = arith.constant 0 : index
    %c1_27 = arith.constant 1 : index
    %c0_28 = arith.constant 0 : index
    %c0_29 = arith.constant 0 : index
    %34 = vector.load %arg3[%c0_26, %c1_27, %c0_28, %c0_29] : memref<1x4x2x128xbf16, #tpu.memory_space<vmem>>, vector<1x1x2x128xbf16>
    %35 = vector.shape_cast %34 : vector<1x1x2x128xbf16> to vector<2x128xbf16>
    %36 = arith.extf %35 : vector<2x128xbf16> to vector<2x128xf32>
    %37 = arith.subf %36, %19 : vector<2x128xf32>
    %38 = math.exp %37 : vector<2x128xf32>
    %39 = arith.addf %28, %38 : vector<2x128xf32>
    %c1_i32 = arith.constant 1 : i32
    %40 = vector.broadcast %c1_i32 : i32 to vector<2x128xi32>
    %41 = arith.cmpi eq, %7, %40 : vector<2x128xi32>
    %42 = arith.select %41, %37, %31 : vector<2x128xi1>, vector<2x128xf32>
    %43 = vector.broadcast %1 : f32 to vector<2x128xf32>
    %44 = arith.select %41, %43, %33 : vector<2x128xi1>, vector<2x128xf32>
    %c0_30 = arith.constant 0 : index
    %c2_31 = arith.constant 2 : index
    %c0_32 = arith.constant 0 : index
    %c0_33 = arith.constant 0 : index
    %45 = vector.load %arg3[%c0_30, %c2_31, %c0_32, %c0_33] : memref<1x4x2x128xbf16, #tpu.memory_space<vmem>>, vector<1x1x2x128xbf16>
    %46 = vector.shape_cast %45 : vector<1x1x2x128xbf16> to vector<2x128xbf16>
    %47 = arith.extf %46 : vector<2x128xbf16> to vector<2x128xf32>
    %48 = arith.subf %47, %19 : vector<2x128xf32>
    %49 = math.exp %48 : vector<2x128xf32>
    %50 = arith.addf %39, %49 : vector<2x128xf32>
    %c2_i32 = arith.constant 2 : i32
    %51 = vector.broadcast %c2_i32 : i32 to vector<2x128xi32>
    %52 = arith.cmpi eq, %7, %51 : vector<2x128xi32>
    %53 = arith.select %52, %48, %42 : vector<2x128xi1>, vector<2x128xf32>
    %54 = vector.broadcast %2 : f32 to vector<2x128xf32>
    %55 = arith.select %52, %54, %44 : vector<2x128xi1>, vector<2x128xf32>
    %c0_34 = arith.constant 0 : index
    %c3_35 = arith.constant 3 : index
    %c0_36 = arith.constant 0 : index
    %c0_37 = arith.constant 0 : index
    %56 = vector.load %arg3[%c0_34, %c3_35, %c0_36, %c0_37] : memref<1x4x2x128xbf16, #tpu.memory_space<vmem>>, vector<1x1x2x128xbf16>
    %57 = vector.shape_cast %56 : vector<1x1x2x128xbf16> to vector<2x128xbf16>
    %58 = arith.extf %57 : vector<2x128xbf16> to vector<2x128xf32>
    %59 = arith.subf %58, %19 : vector<2x128xf32>
    %60 = math.exp %59 : vector<2x128xf32>
    %61 = arith.addf %50, %60 : vector<2x128xf32>
    %c3_i32 = arith.constant 3 : i32
    %62 = vector.broadcast %c3_i32 : i32 to vector<2x128xi32>
    %63 = arith.cmpi eq, %7, %62 : vector<2x128xi32>
    %64 = arith.select %63, %59, %53 : vector<2x128xi1>, vector<2x128xf32>
    %65 = vector.broadcast %3 : f32 to vector<2x128xf32>
    %66 = arith.select %63, %65, %55 : vector<2x128xi1>, vector<2x128xf32>
    %67 = math.log %61 : vector<2x128xf32>
    %68 = arith.subf %67, %64 : vector<2x128xf32>
    %69 = arith.mulf %66, %68 : vector<2x128xf32>
    %cst_38 = arith.constant dense<0.000000e+00> : vector<128xf32>
    %70 = vector.multi_reduction <add>, %69, %cst_38 [0] : vector<2x128xf32> to vector<128xf32>
    %71 = vector.shape_cast %70 : vector<128xf32> to vector<1x128xf32>
    %72 = arith.addf %4, %71 : vector<1x128xf32>
    %c0_39 = arith.constant 0 : index
    %c0_40 = arith.constant 0 : index
    %c0_41 = arith.constant 0 : index
    %c0_42 = arith.constant 0 : index
    %73 = vector.load %arg5[%c0_39, %c0_40, %c0_41, %c0_42] : memref<1x1x1x128xf32, #tpu.memory_space<vmem>>, vector<1x1x1x128xf32>
    %74 = vector.shape_cast %73 : vector<1x1x1x128xf32> to vector<1x128xf32>
    %75 = vector.shape_cast %72 : vector<1x128xf32> to vector<1x1x1x128xf32>
    tpu.vector_store %arg5[%c0_39, %c0_40, %c0_41, %c0_42], %75 {strides = array<i32>} : memref<1x1x1x128xf32, #tpu.memory_space<vmem>>, vector<1x1x1x128xf32>,
    return
  }
  func.func @transform_0(%arg0: i32, %arg1: i32) -> i32 {
    %c0_i32 = arith.constant 0 : i32
    %c0_i32_0 = arith.constant 0 : i32
    return %c0_i32 : i32
  }
  func.func @transform_1(%arg0: i32, %arg1: i32) -> (i32, i32, i32, i32) {
    %c0_i32 = arith.constant 0 : i32
    %c0_i32_0 = arith.constant 0 : i32
    %c0_i32_1 = arith.constant 0 : i32
    return %arg0, %c0_i32, %arg1, %c0_i32_0 : i32, i32, i32, i32
  }
  func.func @transform_2(%arg0: i32, %arg1: i32) -> (i32, i32, i32) {
    %c0_i32 = arith.constant 0 : i32
    %c0_i32_0 = arith.constant 0 : i32
    return %arg0, %arg1, %c0_i32 : i32, i32, i32
  }
  func.func @transform_3(%arg0: i32, %arg1: i32) -> (i32, i32, i32, i32) {
    %c0_i32 = arith.constant 0 : i32
    %c0_i32_0 = arith.constant 0 : i32
    %c0_i32_1 = arith.constant 0 : i32
    return %arg0, %arg1, %c0_i32, %c0_i32_0 : i32, i32, i32, i32
  }
}

</mosaic_0001>

<llo_original>
// kernel: tpu_custom_call.1
$region0: #{tpu_custom_call.1}
  #allocation0 [shape = 'u32[]', space=smem, size = 0x4, offset = 0x4, fixed_abs, tag = 'smem constant byte address 0x4 - core index']
  #allocation1 [shape = 'u32[144,128]{1,0:T(1,128)}', space=vmem, size = 0x12000, scoped, tag = 'internal scratch']
  %s0 = inlined_call_operand.vmem [shape: f32[4], index: 0, kind: input, shape index: {}]
  %s1 = inlined_call_operand.hbm [shape: bf16[6,4,2,128], index: 1, kind: input, shape index: {}]
  %s2 = inlined_call_operand.vmem [shape: u8[6,2,128], index: 2, kind: input, shape index: {}]
  %s3 = inlined_call_operand.hbm [shape: f32[6,1,1,128], index: 3, kind: output, shape index: {}]
  %s4 = sld [smem:[#allocation0]]
  $region53: #{tpu_custom_call.1} parent=0
    _
  %s6 = ssub.s32 1, %s4
  %s7 = scalar_select 0, %s6, %s4
  $region1: #{tpu_custom_call.1} parent=0
    #allocation2 [shape = 'u8[512]{0}', space=smem, size = 0x200, scoped, tag = 'input window, operand 0, single buffered']
    #allocation3 [shape = 's32[2]{0}', space=sflag, size = 0x8, scoped, tag = 'scoped memory for tpu_custom_call.1']
    #allocation4 [shape = 's32[2]{0}', space=sflag, size = 0x8, scoped, tag = 'scoped memory for tpu_custom_call.1']
    #allocation5 [shape = 's32[2]{0}', space=sflag, size = 0x8, scoped, tag = 'scoped memory for tpu_custom_call.1']
    #allocation6 [shape = 'u8[4096]{0}', space=vmem, size = 0x1000, scoped, tag = 'input window, operand 1']
    #allocation7 [shape = 'u8[1024]{0}', space=vmem, size = 0x400, scoped, tag = 'output window, operand 0']
    %8 = vsyncpa [#allocation5], 0
    %9 = vsyncpa [#allocation3], 0
    %s10 = scalar_lea.sflag [#allocation3], 1
    %11 = vsyncpa %s10, 0
    %12 = vsyncpa [#allocation4], 0
    %s13 = scalar_lea.sflag [#allocation4], 1
    %14 = vsyncpa %s13, 0
    loop: start=0, step=1, limit=8
    $region2: #{tpu_custom_call.1} parent=1 // loop_pre_header
      _
    $region3: #{tpu_custom_call.1} parent=1 // loop_header
      %s16 = sphi 0, %s20
      %p17 = scmp.ge.s32.totalorder %s16, 8
      %s23 = sphi 0, %s35
      %s24 = sphi 0, %s31
      %s25 = sphi 0, %s23
      %s26 = sphi 0, %s24
      %s27 = sphi 0, %s25
      %s28 = sphi 0, %s26
      %s36 = sphi 0, %s36
      %s38 = sphi 0, %s36
      %s39 = sphi 0, %s38
      %s53 = sphi 0, %s39
      %s61 = sphi 0, %s63
      %s64 = sphi 0, %s61
      %s65 = sphi 0, %s64
      %s81 = sphi 0, %s65
      %s89 = sphi 0, %s91
      %s92 = sphi 0, %s89
      %s93 = sphi 0, %s92
      %s109 = sphi 0, %s93
      %s117 = sphi 0, %s119
      %s120 = sphi 0, %s117
      %s121 = sphi 0, %s120
      %s137 = sphi 0, %s121
    $region4: #{tpu_custom_call.1} parent=1 // loop_header_branch
      %19 = sbr.rel (%p17) target = $region8
    $region5: #{tpu_custom_call.1} parent=1 // loop_body
      %s21 = ssub.s32 %s16, 1
      %s22 = ssub.s32 %s16, 2
      %s29 = sadd.s32 1, %s24
      %p30 = scmp.ge.s32.totalorder %s29, 1
      %s31 = scalar_select %p30, 0, %s29
      %s32 = sadd.s32 1, %s23
      %s33 = scalar_select %p30, %s32, %s23
      %p34 = scmp.ge.s32.totalorder %s33, 6
      %s35 = scalar_select %p34, 0, %s33
      %s37 = sadd.s32 %s36, 1
      %p40 = scmp.eq.s32.totalorder %s16, 5
      %p41 = scmp.ne.s32.totalorder %s36, %s38
      %p42 = scmp.eq.s32.totalorder %s16, 0
      %p43 = por %p41, %p42
      %p44 = scmp.ne.s32.totalorder %s36, %s38
      %p45 = scmp.eq.s32.totalorder %s21, 5
      %p46 = por %p44, %p45
      %p47 = scmp.ne.s32.totalorder %s38, %s39
      %p48 = scmp.eq.s32.totalorder %s21, 0
      %p49 = por %p47, %p48
      %p50 = scmp.ne.s32.totalorder %s38, %s39
      %p51 = scmp.eq.s32.totalorder %s22, 5
      %p52 = por %p50, %p51
      %p54 = scmp.ne.s32.totalorder %s39, %s53
      %p55 = scmp.eq.s32.totalorder %s22, 0
      %p56 = por %p54, %p55
      %s57 = ssub.s32 %s23, %s35
      %s58 = ssub.s32 %s24, %s31
      %s59 = sor.u32 %s57, %s58
      %p60 = scmp.eq.s32.totalorder %s59, 0
      %s62 = sadd.s32 %s61, 1
      %s63 = scalar_select %p60, %s61, %s62
      %p66 = pneg %p60
      %p67 = scmp.eq.s32.totalorder %s16, 5
      %p68 = por %p66, %p67
      %p69 = scmp.ne.s32.totalorder %s61, %s64
      %p70 = scmp.eq.s32.totalorder %s16, 0
      %p71 = por %p69, %p70
      %p72 = scmp.ne.s32.totalorder %s61, %s64
      %p73 = scmp.eq.s32.totalorder %s21, 5
      %p74 = por %p72, %p73
      %p75 = scmp.ne.s32.totalorder %s64, %s65
      %p76 = scmp.eq.s32.totalorder %s21, 0
      %p77 = por %p75, %p76
      %p78 = scmp.ne.s32.totalorder %s64, %s65
      %p79 = scmp.eq.s32.totalorder %s22, 5
      %p80 = por %p78, %p79
      %p82 = scmp.ne.s32.totalorder %s65, %s81
      %p83 = scmp.eq.s32.totalorder %s22, 0
      %p84 = por %p82, %p83
      %s85 = ssub.s32 %s23, %s35
      %s86 = ssub.s32 %s24, %s31
      %s87 = sor.u32 %s85, %s86
      %p88 = scmp.eq.s32.totalorder %s87, 0
      %s90 = sadd.s32 %s89, 1
      %s91 = scalar_select %p88, %s89, %s90
      %p94 = pneg %p88
      %p95 = scmp.eq.s32.totalorder %s16, 5
      %p96 = por %p94, %p95
      %p97 = scmp.ne.s32.totalorder %s89, %s92
      %p98 = scmp.eq.s32.totalorder %s16, 0
      %p99 = por %p97, %p98
      %p100 = scmp.ne.s32.totalorder %s89, %s92
      %p101 = scmp.eq.s32.totalorder %s21, 5
      %p102 = por %p100, %p101
      %p103 = scmp.ne.s32.totalorder %s92, %s93
      %p104 = scmp.eq.s32.totalorder %s21, 0
      %p105 = por %p103, %p104
      %p106 = scmp.ne.s32.totalorder %s92, %s93
      %p107 = scmp.eq.s32.totalorder %s22, 5
      %p108 = por %p106, %p107
      %p110 = scmp.ne.s32.totalorder %s93, %s109
      %p111 = scmp.eq.s32.totalorder %s22, 0
      %p112 = por %p110, %p111
      %s113 = ssub.s32 %s23, %s35
      %s114 = ssub.s32 %s24, %s31
      %s115 = sor.u32 %s113, %s114
      %p116 = scmp.eq.s32.totalorder %s115, 0
      %s118 = sadd.s32 %s117, 1
      %s119 = scalar_select %p116, %s117, %s118
      %p122 = pneg %p116
      %p123 = scmp.eq.s32.totalorder %s16, 5
      %p124 = por %p122, %p123
      %p125 = scmp.ne.s32.totalorder %s117, %s120
      %p126 = scmp.eq.s32.totalorder %s16, 0
      %p127 = por %p125, %p126
      %p128 = scmp.ne.s32.totalorder %s117, %s120
      %p129 = scmp.eq.s32.totalorder %s21, 5
      %p130 = por %p128, %p129
      %p131 = scmp.ne.s32.totalorder %s120, %s121
      %p132 = scmp.eq.s32.totalorder %s21, 0
      %p133 = por %p131, %p132
      %p134 = scmp.ne.s32.totalorder %s120, %s121
      %p135 = scmp.eq.s32.totalorder %s22, 5
      %p136 = por %p134, %p135
      %p138 = scmp.ne.s32.totalorder %s121, %s137
      %p139 = scmp.eq.s32.totalorder %s22, 0
      %p140 = por %p138, %p139
      %p141 = scmp.le.s32.totalorder 1, %s16
      %p142 = scmp.lt.s32.totalorder %s16, 7
      %p143 = pnand %p141, %p142
      %p144 = pneg %p143
      // Predicated region
      $region9: #{tpu_custom_call.1} parent=5 // pred_check
        _
      $region10: #{tpu_custom_call.1} parent=5 // pred_check_branch
        %146 = sbr.rel (%p143) target = $region12
      $region11: #{tpu_custom_call.1} parent=5 // pred_region
        %s147 = ssub.s32 %s16, 1
        // Predicated region
        $region13: #{tpu_custom_call.1} parent=11 // pred_check
          %p148 = pneg %p49
        $region14: #{tpu_custom_call.1} parent=11 // pred_check_branch
          %150 = sbr.rel (%p148) target = $region16
        $region15: #{tpu_custom_call.1} parent=11 // pred_region
          %s152 = ssub.s32 16, 16
          %153 = vsyncadd [#allocation5], %s152
          %s155 = sshll.u32 %s0, 4
          %s156 = int_to_ptr.vmem [resolvable:$true] %s155
          %158 = dma.vmem_to_smem %s156, 16, [#allocation2], [#allocation5]
        $region16: #{tpu_custom_call.1} parent=11 // pred_fallthru
          _
      $region12: #{tpu_custom_call.1} parent=5 // pred_fallthru
        _
      %p159 = scmp.lt.s32.totalorder %s16, 6
      // Predicated region
      $region17: #{tpu_custom_call.1} parent=5 // pred_check
        %p160 = pneg %p159
      $region18: #{tpu_custom_call.1} parent=5 // pred_check_branch
        %162 = sbr.rel (%p160) target = $region20
      $region19: #{tpu_custom_call.1} parent=5 // pred_region
        // Predicated region
        $region21: #{tpu_custom_call.1} parent=19 // pred_check
          %p163 = pneg %p71
        $region22: #{tpu_custom_call.1} parent=19 // pred_check_branch
          %165 = sbr.rel (%p163) target = $region24
        $region23: #{tpu_custom_call.1} parent=19 // pred_region
          %s166 = sand.u32 %s61, 1
          %s167 = scalar_lea.sflag [#allocation3], %s166
          %s168 = sand.u32 %s61, 1
          %s169 = smul.addr %s168, 4
          %s170 = scalar_lea.vmem [#allocation6], %s169
          %s172 = ssub.s32 64, 64
          %173 = vsyncadd %s167, %s172
          %s174 = smul.addr %s23, 4
          %s175 = sadd.s32 %s24, %s174
          %s176 = smul.addr %s175, 16
          %s177 = scalar_lea.hbm %s1, %s176
          %s178 = sshll.u32 %s170, 4
          %s179 = int_to_ptr.vmem [resolvable:$true] %s178
          %184 = dma.hbm_to_vmem [thread:$0]  %s177, 64, %s179, %s167, 16, 16, 1
        $region24: #{tpu_custom_call.1} parent=19 // pred_fallthru
          _
        // Predicated region
        $region25: #{tpu_custom_call.1} parent=19 // pred_check
          %p185 = pneg %p99
        $region26: #{tpu_custom_call.1} parent=19 // pred_check_branch
          %187 = sbr.rel (%p185) target = $region28
        $region27: #{tpu_custom_call.1} parent=19 // pred_region
          %p188 = scmp.lt.s32.totalorder %s23, 5
          %s189 = scalar_select %p188, %s23, 5
          %p190 = scmp.lt.s32.totalorder %s24, 0
          %s191 = scalar_select %p190, %s24, 0
          %s192 = sadd.s32 %s191, %s189
          %s193 = scalar_lea.vmem %s2, %s192
        $region28: #{tpu_custom_call.1} parent=19 // pred_fallthru
          _
      $region20: #{tpu_custom_call.1} parent=5 // pred_fallthru
        _
      %p194 = scmp.le.s32.totalorder 1, %s16
      %p195 = scmp.lt.s32.totalorder %s16, 7
      %p196 = pnand %p194, %p195
      %p197 = pneg %p196
      // Predicated region
      $region29: #{tpu_custom_call.1} parent=5 // pred_check
        _
      $region30: #{tpu_custom_call.1} parent=5 // pred_check_branch
        %199 = sbr.rel (%p196) target = $region32
      $region31: #{tpu_custom_call.1} parent=5 // pred_region
        %s200 = ssub.s32 %s16, 1
        // Predicated region
        $region33: #{tpu_custom_call.1} parent=31 // pred_check
          %p201 = pneg %p49
        $region34: #{tpu_custom_call.1} parent=31 // pred_check_branch
          %203 = sbr.rel (%p201) target = $region36
        $region35: #{tpu_custom_call.1} parent=31 // pred_region
          %204 = dma.done [#allocation5], 16
        $region36: #{tpu_custom_call.1} parent=31 // pred_fallthru
          _
        %s205 = sand.u32 %s64, 1
        %s206 = scalar_lea.sflag [#allocation3], %s205
        %s207 = sand.u32 %s64, 1
        %s208 = smul.addr %s207, 4
        %s209 = scalar_lea.vmem [#allocation6], %s208
        // Predicated region
        $region37: #{tpu_custom_call.1} parent=31 // pred_check
          %p210 = pneg %p77
        $region38: #{tpu_custom_call.1} parent=31 // pred_check_branch
          %212 = sbr.rel (%p210) target = $region40
        $region39: #{tpu_custom_call.1} parent=31 // pred_region
          %213 = dma.done %s206, 64
        $region40: #{tpu_custom_call.1} parent=31 // pred_fallthru
          _
        %214 = sfence
        %p215 = pneg %p49
        %p216 = pneg %p46
        %s217 = sand.u32 %s64, 1
        %s218 = scalar_lea.sflag [#allocation3], %s217
        %s219 = sand.u32 %s64, 1
        %s220 = smul.addr %s219, 4
        %s221 = scalar_lea.vmem [#allocation6], %s220
        %p222 = pneg %p77
        %p223 = pneg %p74
        %p224 = scmp.lt.s32.totalorder %s25, 5
        %s225 = scalar_select %p224, %s25, 5
        %p226 = scmp.lt.s32.totalorder %s26, 0
        %s227 = scalar_select %p226, %s26, 0
        %s228 = sadd.s32 %s227, %s225
        %s229 = scalar_lea.vmem %s2, %s228
        %p230 = pneg %p105
        %p231 = pneg %p102
        %p232 = pneg %p133
        %p233 = pneg %p130
        %s234 = sand.u32 %s120, 1
        %s235 = scalar_lea.sflag [#allocation4], %s234
        %s236 = sand.u32 %s120, 1
        %s237 = scalar_lea.vmem [#allocation7], %s236
        %p238 = scmp.lt.s32.totalorder %s25, 5
        %s239 = scalar_select %p238, %s25, 5
        %p240 = scmp.lt.s32.totalorder %s26, 0
        %s241 = scalar_select %p240, %s26, 0
        %s242 = sadd.s32 %s241, %s239
        %s243 = scalar_lea.vmem %s2, %s242
        %s244 = sld [smem:[#allocation2]]
        %s245 = sld [smem:[#allocation2 + $0x1]]
        %s246 = sld [smem:[#allocation2 + $0x2]]
        %s247 = sld [smem:[#allocation2 + $0x3]]
        %v248 = vld [vmem:[%s243] sm:$0x1]
        %v249 = vunpack.c.0.s8 %v248
        %v250 = vand.u32 %v249, 255
        %v251 = vld [vmem:[%s209] sm:$0x1]
        %s252 = scalar_lea.vmem %s209, 1 [#allocation6]
        %v253 = vld [vmem:[%s252] sm:$0x1]
        %v254 = vmax.bf16 %v251, %v253
        %s255 = scalar_lea.vmem %s209, 2 [#allocation6]
        %v256 = vld [vmem:[%s255] sm:$0x1]
        %v257 = vmax.bf16 %v254, %v256
        %s258 = scalar_lea.vmem %s209, 3 [#allocation6]
        %v259 = vld [vmem:[%s258] sm:$0x1]
        %v260 = vmax.bf16 %v257, %v259
        %v261 = vunpack.c.l.bf16 %v260
        %v262 = vunpack.c.l.bf16 %v251
        %v263 = vsub.f32 %v262, %v261
        %v264 = vmul.f32 %v263, 1.442695
        %v265 = vpow.pop %v264
        %v266 = vadd.f32 %v265, 0.0
        %vm267 = vcmp.eq.s32.totalorder %v250, 0
        %v268 = vsel %vm267, %v263, 0.0
        %v269 = vstv %s244
        %v270 = vsel %vm267, %v269, 0.0
        %v271 = vunpack.c.l.bf16 %v253
        %v272 = vsub.f32 %v271, %v261
        %v273 = vmul.f32 %v272, 1.442695
        %v274 = vpow.pop %v273
        %v275 = vadd.f32 %v266, %v274
        %vm276 = vcmp.eq.s32.totalorder %v250, 1
        %v277 = vsel %vm276, %v272, %v268
        %v278 = vstv %s245
        %v279 = vsel %vm276, %v278, %v270
        %v280 = vunpack.c.l.bf16 %v256
        %v281 = vsub.f32 %v280, %v261
        %v282 = vmul.f32 %v281, 1.442695
        %v283 = vpow.pop %v282
        %v284 = vadd.f32 %v275, %v283
        %vm285 = vcmp.eq.s32.totalorder %v250, 2
        %v286 = vsel %vm285, %v281, %v277
        %v287 = vstv %s246
        %v288 = vsel %vm285, %v287, %v279
        %v289 = vunpack.c.l.bf16 %v259
        %v290 = vsub.f32 %v289, %v261
        %v291 = vmul.f32 %v290, 1.442695
        %v292 = vpow.pop %v291
        %v293 = vadd.f32 %v284, %v292
        %vm294 = vcmp.eq.s32.totalorder %v250, 3
        %v295 = vsel %vm294, %v290, %v286
        %v296 = vstv %s247
        %v297 = vsel %vm294, %v296, %v288
        %v298 = vlog2.pop %v293
        %v299 = vmul.f32 %v298, 0.6931472
        %v300 = vsub.f32 %v299, %v295
        %v301 = vmul.f32 %v297, %v300
        %vm302 = vcmask 1041408
        %v303 = vsel %vm302, %v301, 0.0
        %v304 = vrot.slane %v303, 4
        %v305 = vadd.f32 %v303, %v304
        %v306 = vrot.slane %v305, 2
        %v307 = vadd.f32 %v305, %v306
        %v308 = vrot.slane %v307, 1
        %v309 = vadd.f32 %v307, %v308
        %v310 = vadd.f32 %v309, 0.0
        %311 = vst [vmem:[%s237] sm:$0x1] %v310
        %s312 = sand.u32 %s120, 1
        %s313 = scalar_lea.sflag [#allocation4], %s312
        %s314 = sand.u32 %s120, 1
        %s315 = scalar_lea.vmem [#allocation7], %s314
        // Predicated region
        $region41: #{tpu_custom_call.1} parent=31 // pred_check
          %p316 = pneg %p130
        $region42: #{tpu_custom_call.1} parent=31 // pred_check_branch
          %318 = sbr.rel (%p316) target = $region44
        $region43: #{tpu_custom_call.1} parent=31 // pred_region
          %s320 = ssub.s32 16, 16
          %321 = vsyncadd %s313, %s320
          %s322 = sadd.s32 %s26, %s25
          %s323 = smul.addr %s322, 16
          %s324 = scalar_lea.hbm %s3, %s323
          %s326 = sshll.u32 %s315, 4
          %s327 = int_to_ptr.vmem [resolvable:$true] %s326
          %329 = dma.vmem_to_hbm [thread:$0]  %s327, 16, %s324, %s313
        $region44: #{tpu_custom_call.1} parent=31 // pred_fallthru
          _
      $region32: #{tpu_custom_call.1} parent=5 // pred_fallthru
        _
      %p330 = scmp.le.s32.totalorder 2, %s16
      // Predicated region
      $region45: #{tpu_custom_call.1} parent=5 // pred_check
        %p331 = pneg %p330
      $region46: #{tpu_custom_call.1} parent=5 // pred_check_branch
        %333 = sbr.rel (%p331) target = $region48
      $region47: #{tpu_custom_call.1} parent=5 // pred_region
        %s334 = ssub.s32 %s16, 2
        // Predicated region
        $region49: #{tpu_custom_call.1} parent=47 // pred_check
          %p335 = pneg %p136
        $region50: #{tpu_custom_call.1} parent=47 // pred_check_branch
          %337 = sbr.rel (%p335) target = $region52
        $region51: #{tpu_custom_call.1} parent=47 // pred_region
          %s338 = sand.u32 %s121, 1
          %s339 = scalar_lea.sflag [#allocation4], %s338
          %s340 = sand.u32 %s121, 1
          %s341 = scalar_lea.vmem [#allocation7], %s340
          %342 = dma.done %s339, 16
        $region52: #{tpu_custom_call.1} parent=47 // pred_fallthru
          _
      $region48: #{tpu_custom_call.1} parent=5 // pred_fallthru
        _
    $region6: #{tpu_custom_call.1} parent=1 // loop_footer
      %s20 = sadd.s32 1, %s16
    $region7: #{tpu_custom_call.1} parent=1 // loop_footer_branch
      %15 = sbr.rel target = $region3
    $region8: #{tpu_custom_call.1} parent=1 // loop_exit
      _
    %343 = vsyncpa [#allocation3], 1
    %s344 = scalar_lea.sflag [#allocation3], 1
    %345 = vsyncpa %s344, 1
    %346 = vsyncpa [#allocation4], 1
    %s347 = scalar_lea.sflag [#allocation4], 1
    %348 = vsyncpa %s347, 1
    %349 = vsyncpa [#allocation5], 1
    %s350 = scalar_lea.sflag [#allocation5], 1
    %351 = vsyncpa %s350, 1

</llo_original>
